<compile_context>
chip_gen: v7x
topology: tpu7x:2x2x1
jax: 0.10.0
libtpu: 0.0.40
codegen_flags: <defaults>
</compile_context>

<pallas_src>
import functools

import jax
import jax.numpy as jnp
from jax import lax
from jax.experimental import pallas as pl
from jax.experimental.pallas import tpu as pltpu


def _round_up(x, m):
    return (x + m - 1) // m * m


def _vmem_budget_bytes():
    """Per-generation scoped-VMEM budget (headroom below physical VMEM)."""
    kind = ""
    try:
        kind = jax.devices()[0].device_kind.lower()
    except Exception:
        pass
    if "v7" in kind:
        return 44 * 1024 * 1024          # v7x: 64 MiB physical per TensorCore
    if "v5" in kind or "v6" in kind:
        return 80 * 1024 * 1024          # v5e/v5p/v6e: 128 MiB physical
    return 32 * 1024 * 1024              # unknown / interpret: conservative


def _vmem_need_bytes(cpad, tk, t_hw, act_bytes, k_tiled):
    """Estimated VMEM footprint of one grid step (double-buffered blocks)."""
    w = 2 * cpad * tk * act_bytes        # W block
    a = 2 * tk * t_hw * act_bytes        # A (im2col) block
    y = 2 * cpad * t_hw * act_bytes      # Y output block
    acc = cpad * t_hw * 4 if k_tiled else 0
    return w + a + y + acc + (1 << 20)   # +1 MiB slack (bias/stats/descriptors)


def _pick_hw_tile(ohw, fits):
    """Largest lane tile (multiple of 128) that fits VMEM with modest padding."""
    cap = _round_up(ohw, 128)
    best = None
    for c in (2048, 1024, 512, 256, 128):
        if c > cap or not fits(c):
            continue
        if best is None:
            best = c
        waste = _round_up(ohw, c) - ohw
        if 4 * waste <= ohw or c == 128:
            return c
    return best if best is not None else 128


# ---------------------------------------------------------------------------
# Kernel 1 (fused): conv-as-GEMM + bias + ReLU + per-tile BN partial stats.
#   w_ref   : (Cpad, tk)            compute dtype
#   a_ref   : (1, tk, t_hw)         compute dtype (per-batch im2col block)
#   bias_ref: (Cpad, 1)             f32
#   y_ref   : (1, Cpad, t_hw)       compute dtype (post-ReLU activations)
#   s_ref/q_ref : (1, 1, Cpad, 1)   f32 per-(n, hw-tile) sum / sum-of-squares
#   acc     : ()            if K fits in one block (weight-resident)
#             (acc_ref,)    f32 (Cpad, t_hw) VMEM scratch when K is tiled
# grid = (N, grid_hw[, grid_k])
# ---------------------------------------------------------------------------
def _conv_relu_stats_kernel(w_ref, a_ref, bias_ref, y_ref, s_ref, q_ref,
                            *acc, t_hw, tail_valid, k_tiled):
    # Grid queries OUTSIDE any pl.when body (interpret-mode safe).
    is_tail_hw = pl.program_id(1) == pl.num_programs(1) - 1

    def finalize(acc_f32):
        y = jnp.maximum(acc_f32 + bias_ref[...], 0.0)
        y_ref[0] = y.astype(y_ref.dtype)

        def write_stats(yv):
            s_ref[0, 0] = jnp.sum(yv, axis=1, keepdims=True)
            q_ref[0, 0] = jnp.sum(yv * yv, axis=1, keepdims=True)

        if tail_valid == t_hw:
            write_stats(y)                        # no lane padding anywhere
        else:
            @pl.when(is_tail_hw)                  # mask only the tail HW tile
            def _():
                col = lax.broadcasted_iota(jnp.int32, y.shape, 1)
                write_stats(jnp.where(col < tail_valid, y, 0.0))

            @pl.when(jnp.logical_not(is_tail_hw))
            def _():
                write_stats(y)

    if not k_tiled:
        # Weight-resident single-K-block path: no accumulator round-trip.
        finalize(jnp.dot(w_ref[...], a_ref[0],
                         preferred_element_type=jnp.float32))
    else:
        (acc_ref,) = acc
        k = pl.program_id(2)
        is_first_k = k == 0
        is_last_k = k == pl.num_programs(2) - 1

        @pl.when(is_first_k)
        def _():
            acc_ref[...] = jnp.zeros_like(acc_ref)

        acc_ref[...] += jnp.dot(w_ref[...], a_ref[0],
                                preferred_element_type=jnp.float32)

        @pl.when(is_last_k)
        def _():
            finalize(acc_ref[...])


def _conv_relu_stats(w_mat, a_mat, bias_col, *, t_hw, tk, k_tiled, tail_valid,
                     vmem_limit):
    n, kpad, ohwpad = a_mat.shape
    cpad = w_mat.shape[0]
    grid_hw = ohwpad // t_hw

    if k_tiled:
        grid = (n, grid_hw, kpad // tk)
        dims = ("parallel", "parallel", "arbitrary")
        w_spec = pl.BlockSpec((cpad, tk), lambda i, j, k: (0, k))
        a_spec = pl.BlockSpec((1, tk, t_hw), lambda i, j, k: (i, k, j))
        b_spec = pl.BlockSpec((cpad, 1), lambda i, j, k: (0, 0))
        y_spec = pl.BlockSpec((1, cpad, t_hw), lambda i, j, k: (i, 0, j))
        s_spec = pl.BlockSpec((1, 1, cpad, 1), lambda i, j, k: (i, j, 0, 0))
        scratch = [pltpu.VMEM((cpad, t_hw), jnp.float32)]
    else:
        grid = (n, grid_hw)
        dims = ("parallel", "parallel")
        w_spec = pl.BlockSpec((cpad, tk), lambda i, j: (0, 0))
        a_spec = pl.BlockSpec((1, tk, t_hw), lambda i, j: (i, 0, j))
        b_spec = pl.BlockSpec((cpad, 1), lambda i, j: (0, 0))
        y_spec = pl.BlockSpec((1, cpad, t_hw), lambda i, j: (i, 0, j))
        s_spec = pl.BlockSpec((1, 1, cpad, 1), lambda i, j: (i, j, 0, 0))
        scratch = []

    return pl.pallas_call(
        functools.partial(_conv_relu_stats_kernel, t_hw=t_hw,
                          tail_valid=tail_valid, k_tiled=k_tiled),
        out_shape=(jax.ShapeDtypeStruct((n, cpad, ohwpad), a_mat.dtype),
                   jax.ShapeDtypeStruct((n, grid_hw, cpad, 1), jnp.float32),
                   jax.ShapeDtypeStruct((n, grid_hw, cpad, 1), jnp.float32)),
        grid=grid,
        in_specs=[w_spec, a_spec, b_spec],
        out_specs=(y_spec, s_spec, s_spec),
        scratch_shapes=scratch,
        compiler_params=pltpu.CompilerParams(
            dimension_semantics=dims, vmem_limit_bytes=vmem_limit),
    )(w_mat, a_mat, bias_col)


# ---------------------------------------------------------------------------
# Kernel 2: per-channel BN affine; emits NCHW(-flattened) output directly.
# ---------------------------------------------------------------------------
def _bn_affine_kernel(y_ref, scale_ref, shift_ref, o_ref):
    y = y_ref[0].astype(jnp.float32)
    o_ref[0] = y * scale_ref[...] + shift_ref[...]


def _bn_affine(y, scale_col, shift_col, out_struct, *, t_hw, vmem_limit):
    n, cpad, ohwpad = y.shape
    grid_hw = ohwpad // t_hw
    return pl.pallas_call(
        _bn_affine_kernel,
        out_shape=out_struct,   # (N, Cout, OH*OW) f32 — padded rows/cols masked
        grid=(n, grid_hw),
        in_specs=[pl.BlockSpec((1, cpad, t_hw), lambda i, j: (i, 0, j)),
                  pl.BlockSpec((cpad, 1), lambda i, j: (0, 0)),
                  pl.BlockSpec((cpad, 1), lambda i, j: (0, 0))],
        out_specs=pl.BlockSpec((1, cpad, t_hw), lambda i, j: (i, 0, j)),
        compiler_params=pltpu.CompilerParams(
            dimension_semantics=("parallel", "parallel"),
            vmem_limit_bytes=vmem_limit),
    )(y, scale_col, shift_col)


# ------------------------------ JAX glue -----------------------------------

def convblock2d_forward(x_nchw, params, *, kernel_size, stride, eps=1e-5,
                        compute_dtype=jnp.bfloat16):
    # compute_dtype=jnp.float32 gives f32 parity with the PyTorch module;
    # bf16 (default) uses the MXU fast path with f32 accumulation.
    w = params["w"]                     # (Cout, Cin, kh, kw)
    b = params["b"]                     # (Cout,) or None
    gamma, beta = params["gamma"], params["beta"]

    n, cin, h, wdim = x_nchw.shape
    cout, _, kh, kw = w.shape
    padding = kernel_size // 2
    if kernel_size % 2 == 0:
        padding -= 1

    oh = (h + 2 * padding - kh) // stride + 1
    ow = (wdim + 2 * padding - kw) // stride + 1
    ohw = oh * ow
    m = n * ohw
    kdim = cin * kh * kw
    act_bytes = jnp.dtype(compute_dtype).itemsize

    # ---- tiling from explicit per-generation VMEM budget -------------------
    cpad = _round_up(cout, 8)
    budget = _vmem_budget_bytes()

    kpad_res = _round_up(kdim, 8)

    def fits_res(t):
        return _vmem_need_bytes(cpad, kpad_res, t, act_bytes, False) <= budget

    if fits_res(128):
        k_tiled = False                 # weight-resident: single K block
        tk = kpad = kpad_res
        t_hw = _pick_hw_tile(ohw, fits_res)
    else:
        k_tiled = True                  # stream K through an f32 accumulator
        tk = 512
        kpad = _round_up(kdim, tk)

        def fits_kt(t):
            return _vmem_need_bytes(cpad, tk, t, act_bytes, True) <= budget

        t_hw = _pick_hw_tile(ohw, fits_kt)

    ohwpad = _round_up(ohw, t_hw)
    grid_hw = ohwpad // t_hw
    tail_valid = ohw - (grid_hw - 1) * t_hw

    # ---- im2col in the compute dtype (single low-precision materialization)
    xq = x_nchw.astype(compute_dtype)
    xpad = jnp.pad(xq, ((0, 0), (0, 0), (padding, padding), (padding, padding)))
    taps = []
    for ki in range(kh):
        for kj in range(kw):
            taps.append(xpad[:, :, ki:ki + stride * (oh - 1) + 1:stride,
                                   kj:kj + stride * (ow - 1) + 1:stride])
    a = jnp.stack(taps, axis=2)                       # (N, Cin, kh*kw, OH, OW)
    a = a.reshape(n, kdim, ohw)                       # K order = (cin, ki, kj)
    a = jnp.pad(a, ((0, 0), (0, kpad - kdim), (0, ohwpad - ohw)))

    w_mat = w.reshape(cout, kdim).astype(compute_dtype)
    w_mat = jnp.pad(w_mat, ((0, cpad - cout), (0, kpad - kdim)))

    bias = b if b is not None else jnp.zeros((cout,), jnp.float32)
    bias_col = jnp.pad(bias.astype(jnp.float32),
                       (0, cpad - cout)).reshape(cpad, 1)

    # ---- pass 1: fused GEMM + bias + ReLU + BN partial statistics ----------
    y, s_part, q_part = _conv_relu_stats(
        w_mat, a, bias_col, t_hw=t_hw, tk=tk, k_tiled=k_tiled,
        tail_valid=tail_valid, vmem_limit=budget)

    # ---- BatchNorm (training mode: biased batch statistics) ----------------
    total_s = jnp.sum(s_part, axis=(0, 1))[:, 0]      # (Cpad,)
    total_q = jnp.sum(q_part, axis=(0, 1))[:, 0]
    mean = total_s / m
    var = jnp.maximum(total_q / m - mean * mean, 0.0)  # guard cancellation
    g = jnp.pad(gamma.astype(jnp.float32), (0, cpad - cout))
    bt = jnp.pad(beta.astype(jnp.float32), (0, cpad - cout))
    scale = g * lax.rsqrt(var + eps)
    shift = bt - mean * scale

    # ---- pass 2: per-channel affine, written straight as (N, Cout, OH*OW) --
    out_struct = jax.ShapeDtypeStruct((n, cout, ohw), jnp.float32)
    out = _bn_affine(y, scale.reshape(cpad, 1), shift.reshape(cpad, 1),
                     out_struct, t_hw=t_hw, vmem_limit=budget)
    return out.reshape(n, cout, oh, ow)               # free contiguous reshape


def init_params(key, in_channels, out_channels, kernel_size, is_conv_bias):
    k1, k2, k3, k4 = jax.random.split(key, 4)
    w = 0.1 * jax.random.normal(
        k1, (out_channels, in_channels, kernel_size, kernel_size), jnp.float32)
    b = (0.1 * jax.random.normal(k2, (out_channels,), jnp.float32)
         if is_conv_bias else None)
    gamma = 1.0 + 0.1 * jax.random.normal(k3, (out_channels,), jnp.float32)
    beta = 0.1 * jax.random.normal(k4, (out_channels,), jnp.float32)
    return {"w": w, "b": b, "gamma": gamma, "beta": beta}


# --------------------------- pure-JAX reference -----------------------------

def convblock2d_ref(x, params, *, kernel_size, stride, eps=1e-5):
    padding = kernel_size // 2
    if kernel_size % 2 == 0:
        padding -= 1
    y = lax.conv_general_dilated(
        x, params["w"], (stride, stride),
        [(padding, padding), (padding, padding)],
        dimension_numbers=("NCHW", "OIHW", "NCHW"))
    if params["b"] is not None:
        y = y + params["b"].reshape(1, -1, 1, 1)
    y = jnp.maximum(y, 0.0)
    mean = jnp.mean(y, axis=(0, 2, 3), keepdims=True)
    var = jnp.mean((y - mean) ** 2, axis=(0, 2, 3), keepdims=True)
    return ((y - mean) / jnp.sqrt(var + eps)
            * params["gamma"].reshape(1, -1, 1, 1)
            + params["beta"].reshape(1, -1, 1, 1))


# ---------------------------------- main ------------------------------------

if __name__ == "__main__":
    in_channels, out_channels = 4, 8
    kernel_size, stride = 3, 2
    is_conv_bias = True

    key = jax.random.PRNGKey(0)
    kx, kp = jax.random.split(key)
    x = jax.random.normal(kx, (2, in_channels, 16, 16), jnp.float32)
    params = init_params(kp, in_channels, out_channels, kernel_size,
                         is_conv_bias)

    fwd = jax.jit(functools.partial(convblock2d_forward,
                                    kernel_size=kernel_size, stride=stride))
    out = jax.block_until_ready(fwd(x, params))

    ref = jax.block_until_ready(
        convblock2d_ref(x, params, kernel_size=kernel_size, stride=stride))

    assert out.shape == ref.shape == (2, out_channels, 8, 8), out.shape
    err = float(jnp.max(jnp.abs(out - ref)))
    # tolerance accounts for bf16 MXU inputs / bf16 intermediate activations
    assert jnp.allclose(out, ref, atol=5e-2, rtol=5e-2), err
    print("KERNEL_OK")
</pallas_src>

<mosaic_0001>
module attributes {stable_mosaic.version = 11 : i64} {
  func.func @_conv_relu_stats_kernel(%arg0: i32, %arg1: i32, %arg2: memref<8x40xbf16, #tpu.memory_space<vmem>>, %arg3: memref<1x40x128xbf16, #tpu.memory_space<vmem>>, %arg4: memref<8x1xf32, #tpu.memory_space<vmem>>, %arg5: memref<1x8x128xbf16, #tpu.memory_space<vmem>>, %arg6: memref<1x1x8x1xf32, #tpu.memory_space<vmem>>, %arg7: memref<1x1x8x1xf32, #tpu.memory_space<vmem>>) attributes {dimension_semantics = [#tpu.dimension_semantics<parallel>, #tpu.dimension_semantics<parallel>], iteration_bounds = array<i64: 2, 1>, scalar_prefetch = 0 : i64, scratch_operands = 0 : i64, tpu.core_type = #tpu.core_type<tc>, window_params = [{pipeline_mode = #tpu.pipeline_mode<synchronous>, transform_indices = @transform_0, window_bounds = array<i64: 8, 40>}, {transform_indices = @transform_1, window_bounds = array<i64: 1, 40, 128>}, {pipeline_mode = #tpu.pipeline_mode<synchronous>, transform_indices = @transform_2, window_bounds = array<i64: 8, 1>}, {transform_indices = @transform_3, window_bounds = array<i64: 1, 8, 128>}, {transform_indices = @transform_4, window_bounds = array<i64: 1, 1, 8, 1>}, {transform_indices = @transform_5, window_bounds = array<i64: 1, 1, 8, 1>}]} {
    %c0_i32 = arith.constant 0 : i32
    %0 = arith.cmpi eq, %arg1, %c0_i32 : i32
    %c0 = arith.constant 0 : index
    %c0_0 = arith.constant 0 : index
    %1 = vector.load %arg2[%c0, %c0_0] : memref<8x40xbf16, #tpu.memory_space<vmem>>, vector<8x40xbf16>
    %c0_1 = arith.constant 0 : index
    %c0_2 = arith.constant 0 : index
    %c0_3 = arith.constant 0 : index
    %2 = vector.load %arg3[%c0_1, %c0_2, %c0_3] : memref<1x40x128xbf16, #tpu.memory_space<vmem>>, vector<1x40x128xbf16>
    %3 = vector.shape_cast %2 : vector<1x40x128xbf16> to vector<40x128xbf16>
    %cst = arith.constant dense<0.000000e+00> : vector<8x128xf32>
    %4 = tpu.matmul %1, %3, %cst {dimension_numbers = #tpu.dot_dimension_numbers<[1], [0], [0], [1], [0, 0, 1, 1], [], []>} : vector<8x40xbf16>, vector<40x128xbf16>, vector<8x128xf32> -> vector<8x128xf32>
    %c0_4 = arith.constant 0 : index
    %c0_5 = arith.constant 0 : index
    %5 = vector.load %arg4[%c0_4, %c0_5] : memref<8x1xf32, #tpu.memory_space<vmem>>, vector<8x1xf32>
    %6 = vector.broadcast %5 : vector<8x1xf32> to vector<8x128xf32>
    %7 = arith.addf %4, %6 : vector<8x128xf32>
    %cst_6 = arith.constant 0.000000e+00 : f32
    %8 = vector.broadcast %cst_6 : f32 to vector<8x128xf32>
    %9 = arith.maximumf %7, %8 : vector<8x128xf32>
    %10 = arith.truncf %9 : vector<8x128xf32> to vector<8x128xbf16>
    %c0_7 = arith.constant 0 : index
    %c0_8 = arith.constant 0 : index
    %c0_9 = arith.constant 0 : index
    %11 = vector.load %arg5[%c0_7, %c0_8, %c0_9] : memref<1x8x128xbf16, #tpu.memory_space<vmem>>, vector<1x8x128xbf16>
    %12 = vector.shape_cast %11 : vector<1x8x128xbf16> to vector<8x128xbf16>
    %13 = vector.shape_cast %10 : vector<8x128xbf16> to vector<1x8x128xbf16>
    tpu.vector_store %arg5[%c0_7, %c0_8, %c0_9], %13 {strides = array<i32>} : memref<1x8x128xbf16, #tpu.memory_space<vmem>>, vector<1x8x128xbf16>,
    %14 = arith.extui %0 : i1 to i32
    %c0_i32_10 = arith.constant 0 : i32
    %15 = arith.cmpi ne, %14, %c0_i32_10 : i32
    scf.if %15 {
      %19 = tpu.iota {dimensions = array<i32: 1>} : vector<8x128xi32>
      %c64_i32 = arith.constant 64 : i32
      %20 = vector.broadcast %c64_i32 : i32 to vector<8x128xi32>
      %21 = arith.cmpi slt, %19, %20 : vector<8x128xi32>
      %cst_12 = arith.constant 0.000000e+00 : f32
      %22 = vector.broadcast %cst_12 : f32 to vector<8x128xf32>
      %23 = arith.select %21, %9, %22 : vector<8x128xi1>, vector<8x128xf32>
      %cst_13 = arith.constant dense<0.000000e+00> : vector<8xf32>
      %24 = vector.multi_reduction <add>, %23, %cst_13 [1] : vector<8x128xf32> to vector<8xf32>
      %25 = vector.shape_cast %24 : vector<8xf32> to vector<8x1xf32>
      %c0_14 = arith.constant 0 : index
      %c0_15 = arith.constant 0 : index
      %c0_16 = arith.constant 0 : index
      %c0_17 = arith.constant 0 : index
      %26 = vector.load %arg6[%c0_14, %c0_15, %c0_16, %c0_17] : memref<1x1x8x1xf32, #tpu.memory_space<vmem>>, vector<1x1x8x1xf32>
      %27 = vector.shape_cast %26 : vector<1x1x8x1xf32> to vector<8x1xf32>
      %28 = vector.shape_cast %25 : vector<8x1xf32> to vector<1x1x8x1xf32>
      tpu.vector_store %arg6[%c0_14, %c0_15, %c0_16, %c0_17], %28 {strides = array<i32>} : memref<1x1x8x1xf32, #tpu.memory_space<vmem>>, vector<1x1x8x1xf32>,
      %29 = arith.mulf %23, %23 : vector<8x128xf32>
      %cst_18 = arith.constant dense<0.000000e+00> : vector<8xf32>
      %30 = vector.multi_reduction <add>, %29, %cst_18 [1] : vector<8x128xf32> to vector<8xf32>
      %31 = vector.shape_cast %30 : vector<8xf32> to vector<8x1xf32>
      %c0_19 = arith.constant 0 : index
      %c0_20 = arith.constant 0 : index
      %c0_21 = arith.constant 0 : index
      %c0_22 = arith.constant 0 : index
      %32 = vector.load %arg7[%c0_19, %c0_20, %c0_21, %c0_22] : memref<1x1x8x1xf32, #tpu.memory_space<vmem>>, vector<1x1x8x1xf32>
      %33 = vector.shape_cast %32 : vector<1x1x8x1xf32> to vector<8x1xf32>
      %34 = vector.shape_cast %31 : vector<8x1xf32> to vector<1x1x8x1xf32>
      tpu.vector_store %arg7[%c0_19, %c0_20, %c0_21, %c0_22], %34 {strides = array<i32>} : memref<1x1x8x1xf32, #tpu.memory_space<vmem>>, vector<1x1x8x1xf32>,
    } else {
    }
    %true = arith.constant true
    %16 = arith.xori %0, %true : i1
    %17 = arith.extui %16 : i1 to i32
    %c0_i32_11 = arith.constant 0 : i32
    %18 = arith.cmpi ne, %17, %c0_i32_11 : i32
    scf.if %18 {
      %cst_12 = arith.constant dense<0.000000e+00> : vector<8xf32>
      %19 = vector.multi_reduction <add>, %9, %cst_12 [1] : vector<8x128xf32> to vector<8xf32>
      %20 = vector.shape_cast %19 : vector<8xf32> to vector<8x1xf32>
      %c0_13 = arith.constant 0 : index
      %c0_14 = arith.constant 0 : index
      %c0_15 = arith.constant 0 : index
      %c0_16 = arith.constant 0 : index
      %21 = vector.load %arg6[%c0_13, %c0_14, %c0_15, %c0_16] : memref<1x1x8x1xf32, #tpu.memory_space<vmem>>, vector<1x1x8x1xf32>
      %22 = vector.shape_cast %21 : vector<1x1x8x1xf32> to vector<8x1xf32>
      %23 = vector.shape_cast %20 : vector<8x1xf32> to vector<1x1x8x1xf32>
      tpu.vector_store %arg6[%c0_13, %c0_14, %c0_15, %c0_16], %23 {strides = array<i32>} : memref<1x1x8x1xf32, #tpu.memory_space<vmem>>, vector<1x1x8x1xf32>,
      %24 = arith.mulf %9, %9 : vector<8x128xf32>
      %cst_17 = arith.constant dense<0.000000e+00> : vector<8xf32>
      %25 = vector.multi_reduction <add>, %24, %cst_17 [1] : vector<8x128xf32> to vector<8xf32>
      %26 = vector.shape_cast %25 : vector<8xf32> to vector<8x1xf32>
      %c0_18 = arith.constant 0 : index
      %c0_19 = arith.constant 0 : index
      %c0_20 = arith.constant 0 : index
      %c0_21 = arith.constant 0 : index
      %27 = vector.load %arg7[%c0_18, %c0_19, %c0_20, %c0_21] : memref<1x1x8x1xf32, #tpu.memory_space<vmem>>, vector<1x1x8x1xf32>
      %28 = vector.shape_cast %27 : vector<1x1x8x1xf32> to vector<8x1xf32>
      %29 = vector.shape_cast %26 : vector<8x1xf32> to vector<1x1x8x1xf32>
      tpu.vector_store %arg7[%c0_18, %c0_19, %c0_20, %c0_21], %29 {strides = array<i32>} : memref<1x1x8x1xf32, #tpu.memory_space<vmem>>, vector<1x1x8x1xf32>,
    } else {
    }
    return
  }
  func.func @transform_0(%arg0: i32, %arg1: i32) -> (i32, i32) {
    %c0_i32 = arith.constant 0 : i32
    %c0_i32_0 = arith.constant 0 : i32
    %c0_i32_1 = arith.constant 0 : i32
    return %c0_i32, %c0_i32_0 : i32, i32
  }
  func.func @transform_1(%arg0: i32, %arg1: i32) -> (i32, i32, i32) {
    %c0_i32 = arith.constant 0 : i32
    %c0_i32_0 = arith.constant 0 : i32
    return %arg0, %c0_i32, %arg1 : i32, i32, i32
  }
  func.func @transform_2(%arg0: i32, %arg1: i32) -> (i32, i32) {
    %c0_i32 = arith.constant 0 : i32
    %c0_i32_0 = arith.constant 0 : i32
    %c0_i32_1 = arith.constant 0 : i32
    return %c0_i32, %c0_i32_0 : i32, i32
  }
  func.func @transform_3(%arg0: i32, %arg1: i32) -> (i32, i32, i32) {
    %c0_i32 = arith.constant 0 : i32
    %c0_i32_0 = arith.constant 0 : i32
    return %arg0, %c0_i32, %arg1 : i32, i32, i32
  }
  func.func @transform_4(%arg0: i32, %arg1: i32) -> (i32, i32, i32, i32) {
    %c0_i32 = arith.constant 0 : i32
    %c0_i32_0 = arith.constant 0 : i32
    %c0_i32_1 = arith.constant 0 : i32
    return %arg0, %arg1, %c0_i32, %c0_i32_0 : i32, i32, i32, i32
  }
  func.func @transform_5(%arg0: i32, %arg1: i32) -> (i32, i32, i32, i32) {
    %c0_i32 = arith.constant 0 : i32
    %c0_i32_0 = arith.constant 0 : i32
    %c0_i32_1 = arith.constant 0 : i32
    return %arg0, %arg1, %c0_i32, %c0_i32_0 : i32, i32, i32, i32
  }
}

module attributes {stable_mosaic.version = 11 : i64} {
  func.func @_bn_affine_kernel(%arg0: i32, %arg1: i32, %arg2: memref<1x8x128xbf16, #tpu.memory_space<vmem>>, %arg3: memref<8x1xf32, #tpu.memory_space<vmem>>, %arg4: memref<8x1xf32, #tpu.memory_space<vmem>>, %arg5: memref<1x8x128xf32, #tpu.memory_space<vmem>>) attributes {dimension_semantics = [#tpu.dimension_semantics<parallel>, #tpu.dimension_semantics<parallel>], iteration_bounds = array<i64: 2, 1>, scalar_prefetch = 0 : i64, scratch_operands = 0 : i64, tpu.core_type = #tpu.core_type<tc>, window_params = [{transform_indices = @transform_0, window_bounds = array<i64: 1, 8, 128>}, {pipeline_mode = #tpu.pipeline_mode<synchronous>, transform_indices = @transform_1, window_bounds = array<i64: 8, 1>}, {pipeline_mode = #tpu.pipeline_mode<synchronous>, transform_indices = @transform_2, window_bounds = array<i64: 8, 1>}, {transform_indices = @transform_3, window_bounds = array<i64: 1, 8, 128>}]} {
    %c0 = arith.constant 0 : index
    %c0_0 = arith.constant 0 : index
    %c0_1 = arith.constant 0 : index
    %0 = vector.load %arg2[%c0, %c0_0, %c0_1] : memref<1x8x128xbf16, #tpu.memory_space<vmem>>, vector<1x8x128xbf16>
    %1 = vector.shape_cast %0 : vector<1x8x128xbf16> to vector<8x128xbf16>
    %2 = arith.extf %1 : vector<8x128xbf16> to vector<8x128xf32>
    %c0_2 = arith.constant 0 : index
    %c0_3 = arith.constant 0 : index
    %3 = vector.load %arg3[%c0_2, %c0_3] : memref<8x1xf32, #tpu.memory_space<vmem>>, vector<8x1xf32>
    %4 = vector.broadcast %3 : vector<8x1xf32> to vector<8x128xf32>
    %5 = arith.mulf %2, %4 : vector<8x128xf32>
    %c0_4 = arith.constant 0 : index
    %c0_5 = arith.constant 0 : index
    %6 = vector.load %arg4[%c0_4, %c0_5] : memref<8x1xf32, #tpu.memory_space<vmem>>, vector<8x1xf32>
    %7 = vector.broadcast %6 : vector<8x1xf32> to vector<8x128xf32>
    %8 = arith.addf %5, %7 : vector<8x128xf32>
    %c0_6 = arith.constant 0 : index
    %c0_7 = arith.constant 0 : index
    %c0_8 = arith.constant 0 : index
    %9 = vector.load %arg5[%c0_6, %c0_7, %c0_8] : memref<1x8x128xf32, #tpu.memory_space<vmem>>, vector<1x8x128xf32>
    %10 = vector.shape_cast %9 : vector<1x8x128xf32> to vector<8x128xf32>
    %11 = vector.shape_cast %8 : vector<8x128xf32> to vector<1x8x128xf32>
    tpu.vector_store %arg5[%c0_6, %c0_7, %c0_8], %11 {strides = array<i32>} : memref<1x8x128xf32, #tpu.memory_space<vmem>>, vector<1x8x128xf32>,
    return
  }
  func.func @transform_0(%arg0: i32, %arg1: i32) -> (i32, i32, i32) {
    %c0_i32 = arith.constant 0 : i32
    %c0_i32_0 = arith.constant 0 : i32
    return %arg0, %c0_i32, %arg1 : i32, i32, i32
  }
  func.func @transform_1(%arg0: i32, %arg1: i32) -> (i32, i32) {
    %c0_i32 = arith.constant 0 : i32
    %c0_i32_0 = arith.constant 0 : i32
    %c0_i32_1 = arith.constant 0 : i32
    return %c0_i32, %c0_i32_0 : i32, i32
  }
  func.func @transform_2(%arg0: i32, %arg1: i32) -> (i32, i32) {
    %c0_i32 = arith.constant 0 : i32
    %c0_i32_0 = arith.constant 0 : i32
    %c0_i32_1 = arith.constant 0 : i32
    return %c0_i32, %c0_i32_0 : i32, i32
  }
  func.func @transform_3(%arg0: i32, %arg1: i32) -> (i32, i32, i32) {
    %c0_i32 = arith.constant 0 : i32
    %c0_i32_0 = arith.constant 0 : i32
    return %arg0, %c0_i32, %arg1 : i32, i32, i32
  }
}

</mosaic_0001>

<llo_original>
// kernel: convblock2d_forward.3
$region0: #{convblock2d_forward.3}
  #allocation0 [shape = 'u32[]', space=smem, size = 0x4, offset = 0x4, fixed_abs, tag = 'smem constant byte address 0x4 - core index']
  #allocation1 [shape = 'u32[144,128]{1,0:T(1,128)}', space=vmem, size = 0x12000, scoped, tag = 'internal scratch']
  %s0 = inlined_call_operand.vmem [shape: bf16[2,8,128], index: 0, kind: input, shape index: {}]
  %s1 = inlined_call_operand.vmem [shape: f32[8,1], index: 1, kind: input, shape index: {}]
  %s2 = inlined_call_operand.vmem [shape: f32[8,1], index: 2, kind: input, shape index: {}]
  %s3 = inlined_call_operand.vmem [shape: f32[2,8,64], index: 3, kind: output, shape index: {}]
  %s4 = sld [smem:[#allocation0]]
  $region45: #{convblock2d_forward.3} parent=0
    _
  %s6 = ssub.s32 1, %s4
  %s7 = scalar_select 0, %s6, %s4
  loop: start=0, step=1, limit=4
  $region2: #{convblock2d_forward.3} parent=0 // loop_pre_header
    _
  $region3: #{convblock2d_forward.3} parent=0 // loop_header
    %s9 = sphi 0, %s13
    %p10 = scmp.ge.s32.totalorder %s9, 4
    %s16 = sphi 0, %s28
    %s17 = sphi 0, %s24
    %s18 = sphi 0, %s16
    %s19 = sphi 0, %s17
    %s20 = sphi 0, %s18
    %s21 = sphi 0, %s19
    %s33 = sphi 0, %s35
    %s36 = sphi 0, %s33
    %s37 = sphi 0, %s36
    %s53 = sphi 0, %s37
    %s57 = sphi 0, %s57
    %s59 = sphi 0, %s57
    %s60 = sphi 0, %s59
    %s74 = sphi 0, %s60
    %s78 = sphi 0, %s78
    %s80 = sphi 0, %s78
    %s81 = sphi 0, %s80
    %s95 = sphi 0, %s81
    %s103 = sphi 0, %s105
    %s106 = sphi 0, %s103
    %s107 = sphi 0, %s106
    %s123 = sphi 0, %s107
  $region4: #{convblock2d_forward.3} parent=0 // loop_header_branch
    %12 = sbr.rel (%p10) target = $region8
  $region5: #{convblock2d_forward.3} parent=0 // loop_body
    %s14 = ssub.s32 %s9, 1
    %s15 = ssub.s32 %s9, 2
    %s22 = sadd.s32 1, %s17
    %p23 = scmp.ge.s32.totalorder %s22, 1
    %s24 = scalar_select %p23, 0, %s22
    %s25 = sadd.s32 1, %s16
    %s26 = scalar_select %p23, %s25, %s16
    %p27 = scmp.ge.s32.totalorder %s26, 2
    %s28 = scalar_select %p27, 0, %s26
    %s29 = ssub.s32 %s16, %s28
    %s30 = ssub.s32 %s17, %s24
    %s31 = sor.u32 %s29, %s30
    %p32 = scmp.eq.s32.totalorder %s31, 0
    %s34 = sadd.s32 %s33, 1
    %s35 = scalar_select %p32, %s33, %s34
    %p38 = pneg %p32
    %p39 = scmp.eq.s32.totalorder %s9, 1
    %p40 = por %p38, %p39
    %p41 = scmp.ne.s32.totalorder %s33, %s36
    %p42 = scmp.eq.s32.totalorder %s9, 0
    %p43 = por %p41, %p42
    %p44 = scmp.ne.s32.totalorder %s33, %s36
    %p45 = scmp.eq.s32.totalorder %s14, 1
    %p46 = por %p44, %p45
    %p47 = scmp.ne.s32.totalorder %s36, %s37
    %p48 = scmp.eq.s32.totalorder %s14, 0
    %p49 = por %p47, %p48
    %p50 = scmp.ne.s32.totalorder %s36, %s37
    %p51 = scmp.eq.s32.totalorder %s15, 1
    %p52 = por %p50, %p51
    %p54 = scmp.ne.s32.totalorder %s37, %s53
    %p55 = scmp.eq.s32.totalorder %s15, 0
    %p56 = por %p54, %p55
    %s58 = sadd.s32 %s57, 1
    %p61 = scmp.eq.s32.totalorder %s9, 1
    %p62 = scmp.ne.s32.totalorder %s57, %s59
    %p63 = scmp.eq.s32.totalorder %s9, 0
    %p64 = por %p62, %p63
    %p65 = scmp.ne.s32.totalorder %s57, %s59
    %p66 = scmp.eq.s32.totalorder %s14, 1
    %p67 = por %p65, %p66
    %p68 = scmp.ne.s32.totalorder %s59, %s60
    %p69 = scmp.eq.s32.totalorder %s14, 0
    %p70 = por %p68, %p69
    %p71 = scmp.ne.s32.totalorder %s59, %s60
    %p72 = scmp.eq.s32.totalorder %s15, 1
    %p73 = por %p71, %p72
    %p75 = scmp.ne.s32.totalorder %s60, %s74
    %p76 = scmp.eq.s32.totalorder %s15, 0
    %p77 = por %p75, %p76
    %s79 = sadd.s32 %s78, 1
    %p82 = scmp.eq.s32.totalorder %s9, 1
    %p83 = scmp.ne.s32.totalorder %s78, %s80
    %p84 = scmp.eq.s32.totalorder %s9, 0
    %p85 = por %p83, %p84
    %p86 = scmp.ne.s32.totalorder %s78, %s80
    %p87 = scmp.eq.s32.totalorder %s14, 1
    %p88 = por %p86, %p87
    %p89 = scmp.ne.s32.totalorder %s80, %s81
    %p90 = scmp.eq.s32.totalorder %s14, 0
    %p91 = por %p89, %p90
    %p92 = scmp.ne.s32.totalorder %s80, %s81
    %p93 = scmp.eq.s32.totalorder %s15, 1
    %p94 = por %p92, %p93
    %p96 = scmp.ne.s32.totalorder %s81, %s95
    %p97 = scmp.eq.s32.totalorder %s15, 0
    %p98 = por %p96, %p97
    %s99 = ssub.s32 %s16, %s28
    %s100 = ssub.s32 %s17, %s24
    %s101 = sor.u32 %s99, %s100
    %p102 = scmp.eq.s32.totalorder %s101, 0
    %s104 = sadd.s32 %s103, 1
    %s105 = scalar_select %p102, %s103, %s104
    %p108 = pneg %p102
    %p109 = scmp.eq.s32.totalorder %s9, 1
    %p110 = por %p108, %p109
    %p111 = scmp.ne.s32.totalorder %s103, %s106
    %p112 = scmp.eq.s32.totalorder %s9, 0
    %p113 = por %p111, %p112
    %p114 = scmp.ne.s32.totalorder %s103, %s106
    %p115 = scmp.eq.s32.totalorder %s14, 1
    %p116 = por %p114, %p115
    %p117 = scmp.ne.s32.totalorder %s106, %s107
    %p118 = scmp.eq.s32.totalorder %s14, 0
    %p119 = por %p117, %p118
    %p120 = scmp.ne.s32.totalorder %s106, %s107
    %p121 = scmp.eq.s32.totalorder %s15, 1
    %p122 = por %p120, %p121
    %p124 = scmp.ne.s32.totalorder %s107, %s123
    %p125 = scmp.eq.s32.totalorder %s15, 0
    %p126 = por %p124, %p125
    %p127 = scmp.le.s32.totalorder 1, %s9
    %p128 = scmp.lt.s32.totalorder %s9, 3
    %p129 = pnand %p127, %p128
    %p130 = pneg %p129
    // Predicated region
    $region9: #{convblock2d_forward.3} parent=5 // pred_check
      _
    $region10: #{convblock2d_forward.3} parent=5 // pred_check_branch
      %132 = sbr.rel (%p129) target = $region12
    $region11: #{convblock2d_forward.3} parent=5 // pred_region
      %s133 = ssub.s32 %s9, 1
      // Predicated region
      $region13: #{convblock2d_forward.3} parent=11 // pred_check
        %p134 = pneg %p70
      $region14: #{convblock2d_forward.3} parent=11 // pred_check_branch
        %136 = sbr.rel (%p134) target = $region16
      $region15: #{convblock2d_forward.3} parent=11 // pred_region
        _
      $region16: #{convblock2d_forward.3} parent=11 // pred_fallthru
        _
      // Predicated region
      $region17: #{convblock2d_forward.3} parent=11 // pred_check
        %p137 = pneg %p91
      $region18: #{convblock2d_forward.3} parent=11 // pred_check_branch
        %139 = sbr.rel (%p137) target = $region20
      $region19: #{convblock2d_forward.3} parent=11 // pred_region
        _
      $region20: #{convblock2d_forward.3} parent=11 // pred_fallthru
        _
    $region12: #{convblock2d_forward.3} parent=5 // pred_fallthru
      _
    %p140 = scmp.lt.s32.totalorder %s9, 2
    // Predicated region
    $region21: #{convblock2d_forward.3} parent=5 // pred_check
      %p141 = pneg %p140
    $region22: #{convblock2d_forward.3} parent=5 // pred_check_branch
      %143 = sbr.rel (%p141) target = $region24
    $region23: #{convblock2d_forward.3} parent=5 // pred_region
      // Predicated region
      $region25: #{convblock2d_forward.3} parent=23 // pred_check
        %p144 = pneg %p43
      $region26: #{convblock2d_forward.3} parent=23 // pred_check_branch
        %146 = sbr.rel (%p144) target = $region28
      $region27: #{convblock2d_forward.3} parent=23 // pred_region
        %p147 = scmp.lt.s32.totalorder %s16, 1
        %s148 = scalar_select %p147, %s16, 1
        %p149 = scmp.lt.s32.totalorder %s17, 0
        %s150 = scalar_select %p149, %s17, 0
        %s151 = sadd.s32 %s150, %s148
        %s152 = smul.addr %s151, 4
        %s153 = scalar_lea.vmem %s0, %s152
      $region28: #{convblock2d_forward.3} parent=23 // pred_fallthru
        _
    $region24: #{convblock2d_forward.3} parent=5 // pred_fallthru
      _
    %p154 = scmp.le.s32.totalorder 1, %s9
    %p155 = scmp.lt.s32.totalorder %s9, 3
    %p156 = pnand %p154, %p155
    %p157 = pneg %p156
    // Predicated region
    $region29: #{convblock2d_forward.3} parent=5 // pred_check
      _
    $region30: #{convblock2d_forward.3} parent=5 // pred_check_branch
      %159 = sbr.rel (%p156) target = $region32
    $region31: #{convblock2d_forward.3} parent=5 // pred_region
      %s160 = ssub.s32 %s9, 1
      %p161 = scmp.lt.s32.totalorder %s18, 1
      %s162 = scalar_select %p161, %s18, 1
      %p163 = scmp.lt.s32.totalorder %s19, 0
      %s164 = scalar_select %p163, %s19, 0
      %s165 = sadd.s32 %s164, %s162
      %s166 = smul.addr %s165, 4
      %s167 = scalar_lea.vmem %s0, %s166
      %p168 = pneg %p49
      %p169 = pneg %p46
      %p170 = pneg %p70
      %p171 = pneg %p67
      %p172 = pneg %p91
      %p173 = pneg %p88
      %p174 = pneg %p119
      %p175 = pneg %p116
      %p176 = scmp.lt.s32.totalorder %s18, 1
      %s177 = scalar_select %p176, %s18, 1
      %p178 = scmp.lt.s32.totalorder %s19, 0
      %s179 = scalar_select %p178, %s19, 0
      %s180 = sadd.s32 %s179, %s177
      %s181 = smul.addr %s180, 8
      %s182 = scalar_lea.vmem %s3, %s181
      %p183 = scmp.lt.s32.totalorder %s18, 1
      %s184 = scalar_select %p183, %s18, 1
      %p185 = scmp.lt.s32.totalorder %s19, 0
      %s186 = scalar_select %p185, %s19, 0
      %s187 = sadd.s32 %s186, %s184
      %s188 = smul.addr %s187, 4
      %s189 = scalar_lea.vmem %s0, %s188
      %p190 = scmp.lt.s32.totalorder %s18, 1
      %s191 = scalar_select %p190, %s18, 1
      %p192 = scmp.lt.s32.totalorder %s19, 0
      %s193 = scalar_select %p192, %s19, 0
      %s194 = sadd.s32 %s193, %s191
      %s195 = smul.addr %s194, 8
      %s196 = scalar_lea.vmem %s3, %s195
      %v197 = vld [vmem:[%s189] sm:$0xf]
      %v198 = vunpack.c.l.bf16 %v197
      %v199 = vld [vmem:[%s1] sm:$0xff]
      %201 = vset.pattern.permute.xlu0 0
      %202 = vperm.xlu0 %201, %v199
      %v203 = vpop.permute.xlu0 %202
      %v205 = vmul.f32 %v198, %v203
      %v206 = vld [vmem:[%s2] sm:$0xff]
      %208 = vset.pattern.permute.xlu0 0
      %209 = vperm.xlu0 %208, %v206
      %v210 = vpop.permute.xlu0 %209
      %v212 = vadd.f32 %v205, %v210
      %213 = vst [vmem:[%s196] sm:$0xff] %v212
      %p214 = scmp.lt.s32.totalorder %s18, 1
      %s215 = scalar_select %p214, %s18, 1
      %p216 = scmp.lt.s32.totalorder %s19, 0
      %s217 = scalar_select %p216, %s19, 0
      %s218 = sadd.s32 %s217, %s215
      %s219 = smul.addr %s218, 8
      %s220 = scalar_lea.vmem %s3, %s219
      // Predicated region
      $region33: #{convblock2d_forward.3} parent=31 // pred_check
        %p221 = pneg %p116
      $region34: #{convblock2d_forward.3} parent=31 // pred_check_branch
        %223 = sbr.rel (%p221) target = $region36
      $region35: #{convblock2d_forward.3} parent=31 // pred_region
        _
      $region36: #{convblock2d_forward.3} parent=31 // pred_fallthru
        _
    $region32: #{convblock2d_forward.3} parent=5 // pred_fallthru
      _
    %p224 = scmp.le.s32.totalorder 2, %s9
    // Predicated region
    $region37: #{convblock2d_forward.3} parent=5 // pred_check
      %p225 = pneg %p224
    $region38: #{convblock2d_forward.3} parent=5 // pred_check_branch
      %227 = sbr.rel (%p225) target = $region40
    $region39: #{convblock2d_forward.3} parent=5 // pred_region
      %s228 = ssub.s32 %s9, 2
      // Predicated region
      $region41: #{convblock2d_forward.3} parent=39 // pred_check
        %p229 = pneg %p122
      $region42: #{convblock2d_forward.3} parent=39 // pred_check_branch
        %231 = sbr.rel (%p229) target = $region44
      $region43: #{convblock2d_forward.3} parent=39 // pred_region
        %p232 = scmp.lt.s32.totalorder %s20, 1
        %s233 = scalar_select %p232, %s20, 1
        %p234 = scmp.lt.s32.totalorder %s21, 0
        %s235 = scalar_select %p234, %s21, 0
        %s236 = sadd.s32 %s235, %s233
        %s237 = smul.addr %s236, 8
        %s238 = scalar_lea.vmem %s3, %s237
      $region44: #{convblock2d_forward.3} parent=39 // pred_fallthru
        _
    $region40: #{convblock2d_forward.3} parent=5 // pred_fallthru
      _
  $region6: #{convblock2d_forward.3} parent=0 // loop_footer
    %s13 = sadd.s32 1, %s9
  $region7: #{convblock2d_forward.3} parent=0 // loop_footer_branch
    %8 = sbr.rel target = $region3
  $region8: #{convblock2d_forward.3} parent=0 // loop_exit
    _

// kernel: convblock2d_forward.2
$region0: #{convblock2d_forward.2}
  #allocation0 [shape = 'u32[]', space=smem, size = 0x4, offset = 0x4, fixed_abs, tag = 'smem constant byte address 0x4 - core index']
  #allocation1 [shape = 'u32[144,128]{1,0:T(1,128)}', space=vmem, size = 0x12000, scoped, tag = 'internal scratch']
  %s0 = inlined_call_operand.vmem [shape: bf16[8,40], index: 0, kind: input, shape index: {}]
  %s1 = inlined_call_operand.vmem [shape: bf16[2,40,128], index: 1, kind: input, shape index: {}]
  %s2 = inlined_call_operand.vmem [shape: f32[8,1], index: 2, kind: input, shape index: {}]
  %s3 = inlined_call_operand.vmem [shape: bf16[2,8,128], index: 3, kind: output, shape index: {0}]
  %s4 = inlined_call_operand.vmem [shape: f32[2,1,8,1], index: 4, kind: output, shape index: {1}]
  %s5 = inlined_call_operand.vmem [shape: f32[2,1,8,1], index: 5, kind: output, shape index: {2}]
  %6 = xla_tuple %s3, %s4, %s5
  %s7 = sld [smem:[#allocation0]]
  $region69: #{convblock2d_forward.2} parent=0
    _
  %s9 = ssub.s32 1, %s7
  %s10 = scalar_select 0, %s9, %s7
  loop: start=0, step=1, limit=4
  $region2: #{convblock2d_forward.2} parent=0 // loop_pre_header
    _
  $region3: #{convblock2d_forward.2} parent=0 // loop_header
    %s12 = sphi 0, %s16
    %p13 = scmp.ge.s32.totalorder %s12, 4
    %s19 = sphi 0, %s31
    %s20 = sphi 0, %s27
    %s21 = sphi 0, %s19
    %s22 = sphi 0, %s20
    %s23 = sphi 0, %s21
    %s24 = sphi 0, %s22
    %s32 = sphi 0, %s32
    %s34 = sphi 0, %s32
    %s35 = sphi 0, %s34
    %s49 = sphi 0, %s35
    %s57 = sphi 0, %s59
    %s60 = sphi 0, %s57
    %s61 = sphi 0, %s60
    %s77 = sphi 0, %s61
    %s81 = sphi 0, %s81
    %s83 = sphi 0, %s81
    %s84 = sphi 0, %s83
    %s98 = sphi 0, %s84
    %s106 = sphi 0, %s108
    %s109 = sphi 0, %s106
    %s110 = sphi 0, %s109
    %s126 = sphi 0, %s110
    %s134 = sphi 0, %s136
    %s137 = sphi 0, %s134
    %s138 = sphi 0, %s137
    %s154 = sphi 0, %s138
    %s162 = sphi 0, %s164
    %s165 = sphi 0, %s162
    %s166 = sphi 0, %s165
    %s182 = sphi 0, %s166
  $region4: #{convblock2d_forward.2} parent=0 // loop_header_branch
    %15 = sbr.rel (%p13) target = $region8
  $region5: #{convblock2d_forward.2} parent=0 // loop_body
    %s17 = ssub.s32 %s12, 1
    %s18 = ssub.s32 %s12, 2
    %s25 = sadd.s32 1, %s20
    %p26 = scmp.ge.s32.totalorder %s25, 1
    %s27 = scalar_select %p26, 0, %s25
    %s28 = sadd.s32 1, %s19
    %s29 = scalar_select %p26, %s28, %s19
    %p30 = scmp.ge.s32.totalorder %s29, 2
    %s31 = scalar_select %p30, 0, %s29
    %s33 = sadd.s32 %s32, 1
    %p36 = scmp.eq.s32.totalorder %s12, 1
    %p37 = scmp.ne.s32.totalorder %s32, %s34
    %p38 = scmp.eq.s32.totalorder %s12, 0
    %p39 = por %p37, %p38
    %p40 = scmp.ne.s32.totalorder %s32, %s34
    %p41 = scmp.eq.s32.totalorder %s17, 1
    %p42 = por %p40, %p41
    %p43 = scmp.ne.s32.totalorder %s34, %s35
    %p44 = scmp.eq.s32.totalorder %s17, 0
    %p45 = por %p43, %p44
    %p46 = scmp.ne.s32.totalorder %s34, %s35
    %p47 = scmp.eq.s32.totalorder %s18, 1
    %p48 = por %p46, %p47
    %p50 = scmp.ne.s32.totalorder %s35, %s49
    %p51 = scmp.eq.s32.totalorder %s18, 0
    %p52 = por %p50, %p51
    %s53 = ssub.s32 %s19, %s31
    %s54 = ssub.s32 %s20, %s27
    %s55 = sor.u32 %s53, %s54
    %p56 = scmp.eq.s32.totalorder %s55, 0
    %s58 = sadd.s32 %s57, 1
    %s59 = scalar_select %p56, %s57, %s58
    %p62 = pneg %p56
    %p63 = scmp.eq.s32.totalorder %s12, 1
    %p64 = por %p62, %p63
    %p65 = scmp.ne.s32.totalorder %s57, %s60
    %p66 = scmp.eq.s32.totalorder %s12, 0
    %p67 = por %p65, %p66
    %p68 = scmp.ne.s32.totalorder %s57, %s60
    %p69 = scmp.eq.s32.totalorder %s17, 1
    %p70 = por %p68, %p69
    %p71 = scmp.ne.s32.totalorder %s60, %s61
    %p72 = scmp.eq.s32.totalorder %s17, 0
    %p73 = por %p71, %p72
    %p74 = scmp.ne.s32.totalorder %s60, %s61
    %p75 = scmp.eq.s32.totalorder %s18, 1
    %p76 = por %p74, %p75
    %p78 = scmp.ne.s32.totalorder %s61, %s77
    %p79 = scmp.eq.s32.totalorder %s18, 0
    %p80 = por %p78, %p79
    %s82 = sadd.s32 %s81, 1
    %p85 = scmp.eq.s32.totalorder %s12, 1
    %p86 = scmp.ne.s32.totalorder %s81, %s83
    %p87 = scmp.eq.s32.totalorder %s12, 0
    %p88 = por %p86, %p87
    %p89 = scmp.ne.s32.totalorder %s81, %s83
    %p90 = scmp.eq.s32.totalorder %s17, 1
    %p91 = por %p89, %p90
    %p92 = scmp.ne.s32.totalorder %s83, %s84
    %p93 = scmp.eq.s32.totalorder %s17, 0
    %p94 = por %p92, %p93
    %p95 = scmp.ne.s32.totalorder %s83, %s84
    %p96 = scmp.eq.s32.totalorder %s18, 1
    %p97 = por %p95, %p96
    %p99 = scmp.ne.s32.totalorder %s84, %s98
    %p100 = scmp.eq.s32.totalorder %s18, 0
    %p101 = por %p99, %p100
    %s102 = ssub.s32 %s19, %s31
    %s103 = ssub.s32 %s20, %s27
    %s104 = sor.u32 %s102, %s103
    %p105 = scmp.eq.s32.totalorder %s104, 0
    %s107 = sadd.s32 %s106, 1
    %s108 = scalar_select %p105, %s106, %s107
    %p111 = pneg %p105
    %p112 = scmp.eq.s32.totalorder %s12, 1
    %p113 = por %p111, %p112
    %p114 = scmp.ne.s32.totalorder %s106, %s109
    %p115 = scmp.eq.s32.totalorder %s12, 0
    %p116 = por %p114, %p115
    %p117 = scmp.ne.s32.totalorder %s106, %s109
    %p118 = scmp.eq.s32.totalorder %s17, 1
    %p119 = por %p117, %p118
    %p120 = scmp.ne.s32.totalorder %s109, %s110
    %p121 = scmp.eq.s32.totalorder %s17, 0
    %p122 = por %p120, %p121
    %p123 = scmp.ne.s32.totalorder %s109, %s110
    %p124 = scmp.eq.s32.totalorder %s18, 1
    %p125 = por %p123, %p124
    %p127 = scmp.ne.s32.totalorder %s110, %s126
    %p128 = scmp.eq.s32.totalorder %s18, 0
    %p129 = por %p127, %p128
    %s130 = ssub.s32 %s19, %s31
    %s131 = ssub.s32 %s20, %s27
    %s132 = sor.u32 %s130, %s131
    %p133 = scmp.eq.s32.totalorder %s132, 0
    %s135 = sadd.s32 %s134, 1
    %s136 = scalar_select %p133, %s134, %s135
    %p139 = pneg %p133
    %p140 = scmp.eq.s32.totalorder %s12, 1
    %p141 = por %p139, %p140
    %p142 = scmp.ne.s32.totalorder %s134, %s137
    %p143 = scmp.eq.s32.totalorder %s12, 0
    %p144 = por %p142, %p143
    %p145 = scmp.ne.s32.totalorder %s134, %s137
    %p146 = scmp.eq.s32.totalorder %s17, 1
    %p147 = por %p145, %p146
    %p148 = scmp.ne.s32.totalorder %s137, %s138
    %p149 = scmp.eq.s32.totalorder %s17, 0
    %p150 = por %p148, %p149
    %p151 = scmp.ne.s32.totalorder %s137, %s138
    %p152 = scmp.eq.s32.totalorder %s18, 1
    %p153 = por %p151, %p152
    %p155 = scmp.ne.s32.totalorder %s138, %s154
    %p156 = scmp.eq.s32.totalorder %s18, 0
    %p157 = por %p155, %p156
    %s158 = ssub.s32 %s19, %s31
    %s159 = ssub.s32 %s20, %s27
    %s160 = sor.u32 %s158, %s159
    %p161 = scmp.eq.s32.totalorder %s160, 0
    %s163 = sadd.s32 %s162, 1
    %s164 = scalar_select %p161, %s162, %s163
    %p167 = pneg %p161
    %p168 = scmp.eq.s32.totalorder %s12, 1
    %p169 = por %p167, %p168
    %p170 = scmp.ne.s32.totalorder %s162, %s165
    %p171 = scmp.eq.s32.totalorder %s12, 0
    %p172 = por %p170, %p171
    %p173 = scmp.ne.s32.totalorder %s162, %s165
    %p174 = scmp.eq.s32.totalorder %s17, 1
    %p175 = por %p173, %p174
    %p176 = scmp.ne.s32.totalorder %s165, %s166
    %p177 = scmp.eq.s32.totalorder %s17, 0
    %p178 = por %p176, %p177
    %p179 = scmp.ne.s32.totalorder %s165, %s166
    %p180 = scmp.eq.s32.totalorder %s18, 1
    %p181 = por %p179, %p180
    %p183 = scmp.ne.s32.totalorder %s166, %s182
    %p184 = scmp.eq.s32.totalorder %s18, 0
    %p185 = por %p183, %p184
    %p186 = scmp.le.s32.totalorder 1, %s12
    %p187 = scmp.lt.s32.totalorder %s12, 3
    %p188 = pnand %p186, %p187
    %p189 = pneg %p188
    // Predicated region
    $region9: #{convblock2d_forward.2} parent=5 // pred_check
      _
    $region10: #{convblock2d_forward.2} parent=5 // pred_check_branch
      %191 = sbr.rel (%p188) target = $region12
    $region11: #{convblock2d_forward.2} parent=5 // pred_region
      %s192 = ssub.s32 %s12, 1
      // Predicated region
      $region13: #{convblock2d_forward.2} parent=11 // pred_check
        %p193 = pneg %p45
      $region14: #{convblock2d_forward.2} parent=11 // pred_check_branch
        %195 = sbr.rel (%p193) target = $region16
      $region15: #{convblock2d_forward.2} parent=11 // pred_region
        _
      $region16: #{convblock2d_forward.2} parent=11 // pred_fallthru
        _
      // Predicated region
      $region17: #{convblock2d_forward.2} parent=11 // pred_check
        %p196 = pneg %p94
      $region18: #{convblock2d_forward.2} parent=11 // pred_check_branch
        %198 = sbr.rel (%p196) target = $region20
      $region19: #{convblock2d_forward.2} parent=11 // pred_region
        _
      $region20: #{convblock2d_forward.2} parent=11 // pred_fallthru
        _
    $region12: #{convblock2d_forward.2} parent=5 // pred_fallthru
      _
    %p199 = scmp.lt.s32.totalorder %s12, 2
    // Predicated region
    $region21: #{convblock2d_forward.2} parent=5 // pred_check
      %p200 = pneg %p199
    $region22: #{convblock2d_forward.2} parent=5 // pred_check_branch
      %202 = sbr.rel (%p200) target = $region24
    $region23: #{convblock2d_forward.2} parent=5 // pred_region
      // Predicated region
      $region25: #{convblock2d_forward.2} parent=23 // pred_check
        %p203 = pneg %p67
      $region26: #{convblock2d_forward.2} parent=23 // pred_check_branch
        %205 = sbr.rel (%p203) target = $region28
      $region27: #{convblock2d_forward.2} parent=23 // pred_region
        %p206 = scmp.lt.s32.totalorder %s19, 1
        %s207 = scalar_select %p206, %s19, 1
        %p208 = scmp.lt.s32.totalorder %s20, 0
        %s209 = scalar_select %p208, %s20, 0
        %s210 = smul.addr %s207, 5
        %s211 = sadd.s32 %s209, %s210
        %s212 = smul.addr %s211, 4
        %s213 = scalar_lea.vmem %s1, %s212
      $region28: #{convblock2d_forward.2} parent=23 // pred_fallthru
        _
    $region24: #{convblock2d_forward.2} parent=5 // pred_fallthru
      _
    %p214 = scmp.le.s32.totalorder 1, %s12
    %p215 = scmp.lt.s32.totalorder %s12, 3
    %p216 = pnand %p214, %p215
    %p217 = pneg %p216
    // Predicated region
    $region29: #{convblock2d_forward.2} parent=5 // pred_check
      _
    $region30: #{convblock2d_forward.2} parent=5 // pred_check_branch
      %219 = sbr.rel (%p216) target = $region32
    $region31: #{convblock2d_forward.2} parent=5 // pred_region
      %s220 = ssub.s32 %s12, 1
      %p221 = pneg %p45
      %p222 = pneg %p42
      %p223 = scmp.lt.s32.totalorder %s21, 1
      %s224 = scalar_select %p223, %s21, 1
      %p225 = scmp.lt.s32.totalorder %s22, 0
      %s226 = scalar_select %p225, %s22, 0
      %s227 = smul.addr %s224, 5
      %s228 = sadd.s32 %s226, %s227
      %s229 = smul.addr %s228, 4
      %s230 = scalar_lea.vmem %s1, %s229
      %p231 = pneg %p73
      %p232 = pneg %p70
      %p233 = pneg %p94
      %p234 = pneg %p91
      %p235 = pneg %p122
      %p236 = pneg %p119
      %p237 = scmp.lt.s32.totalorder %s21, 1
      %s238 = scalar_select %p237, %s21, 1
      %p239 = scmp.lt.s32.totalorder %s22, 0
      %s240 = scalar_select %p239, %s22, 0
      %s241 = sadd.s32 %s240, %s238
      %s242 = smul.addr %s241, 4
      %s243 = scalar_lea.vmem %s3, %s242
      %p244 = pneg %p150
      %p245 = pneg %p147
      %p246 = scmp.lt.s32.totalorder %s21, 1
      %s247 = scalar_select %p246, %s21, 1
      %p248 = scmp.lt.s32.totalorder %s22, 0
      %s249 = scalar_select %p248, %s22, 0
      %s250 = sadd.s32 %s249, %s247
      %s251 = smul.addr %s250, 8
      %s252 = scalar_lea.vmem %s4, %s251
      %p253 = pneg %p178
      %p254 = pneg %p175
      %p255 = scmp.lt.s32.totalorder %s21, 1
      %s256 = scalar_select %p255, %s21, 1
      %p257 = scmp.lt.s32.totalorder %s22, 0
      %s258 = scalar_select %p257, %s22, 0
      %s259 = sadd.s32 %s258, %s256
      %s260 = smul.addr %s259, 8
      %s261 = scalar_lea.vmem %s5, %s260
      %p262 = scmp.lt.s32.totalorder %s21, 1
      %s263 = scalar_select %p262, %s21, 1
      %p264 = scmp.lt.s32.totalorder %s22, 0
      %s265 = scalar_select %p264, %s22, 0
      %s266 = smul.addr %s263, 5
      %s267 = sadd.s32 %s265, %s266
      %s268 = smul.addr %s267, 4
      %s269 = scalar_lea.vmem %s1, %s268
      %p270 = scmp.lt.s32.totalorder %s21, 1
      %s271 = scalar_select %p270, %s21, 1
      %p272 = scmp.lt.s32.totalorder %s22, 0
      %s273 = scalar_select %p272, %s22, 0
      %s274 = sadd.s32 %s273, %s271
      %s275 = smul.addr %s274, 4
      %s276 = scalar_lea.vmem %s3, %s275
      %p277 = scmp.lt.s32.totalorder %s21, 1
      %s278 = scalar_select %p277, %s21, 1
      %p279 = scmp.lt.s32.totalorder %s22, 0
      %s280 = scalar_select %p279, %s22, 0
      %s281 = sadd.s32 %s280, %s278
      %s282 = smul.addr %s281, 8
      %s283 = scalar_lea.vmem %s4, %s282
      %p284 = scmp.lt.s32.totalorder %s21, 1
      %s285 = scalar_select %p284, %s21, 1
      %p286 = scmp.lt.s32.totalorder %s22, 0
      %s287 = scalar_select %p286, %s22, 0
      %s288 = sadd.s32 %s287, %s285
      %s289 = smul.addr %s288, 8
      %s290 = scalar_lea.vmem %s5, %s289
      %p292 = scmp.eq.s32.totalorder %s22, 0
      %v293 = vld [vmem:[%s0] sm:$0xf]
      %v294 = vld [vmem:[%s269] sm:$0xf]
      %v295 = vld [vmem:[%s269 + $0x4] sm:$0xf]
      %v296 = vld [vmem:[%s269 + $0x8] sm:$0xf]
      %v297 = vld [vmem:[%s269 + $0xc] sm:$0xf]
      %v298 = vld [vmem:[%s269 + $0x10] sm:$0xf]
      %v299 = vld [vmem:[%s2] sm:$0xff]
      %301 = vset.pattern.permute.xlu0 0
      %302 = vperm.xlu0 %301, %v299
      %v303 = vpop.permute.xlu0 %302
      %v310 = vunpack.c.l.b16 %v294
      %v311 = vunpack.c.l.b16 %v295
      %v312 = vunpack.c.l.b16 %v296
      %v313 = vunpack.c.l.b16 %v297
      %v314 = vunpack.c.l.b16 %v298
      %v315 = vpack.c.b16 %v311, %v310
      %v316 = vpack.c.b16 %v313, %v312
      %v317 = vpack.c.b16 %v314, %v314
      %vm320 = vcmask 326656
      %v322 = vsel %vm320, %v293, 0
      %vm324 = vcmask 1043456
      %v326 = vsel %vm324, %v317, 0
      %328 = vmatprep.subr.bf16.mxu0 0
      %329 = vmatpush1.bf16.msra.mxu0 %v315
      %330 = vmatprep.subr.bf16.mxu0 0
      %331 = vmatpush1.bf16.msra.mxu0 %v316
      %332 = vmatprep.subr.bf16.mxu0 0
      %333 = vmatpush1.bf16.msra.mxu0 %v326
      %334 = vmatprep.subr.bf16.mxu0 0
      %335 = vmatpush1.bf16.msra.mxu0 0
      %336 = vmatprep.subr.bf16.mxu0 0
      %337 = vmatpush1.bf16.msra.mxu0 0
      %338 = vmatprep.subr.bf16.mxu0 0
      %339 = vmatpush1.bf16.msra.mxu0 0
      %340 = vmatprep.subr.bf16.mxu0 0
      %341 = vmatpush1.bf16.msra.mxu0 0
      %342 = vmatprep.subr.bf16.mxu0 0
      %343 = vmatpush1.bf16.msra.mxu0 0
      %344 = vmatprep.subr.bf16.mxu0 0
      %345 = vmatpush1.bf16.msra.mxu0 0
      %346 = vmatprep.subr.bf16.mxu0 0
      %347 = vmatpush1.bf16.msra.mxu0 0
      %348 = vmatprep.subr.bf16.mxu0 0
      %349 = vmatpush1.bf16.msra.mxu0 0
      %350 = vmatprep.subr.bf16.mxu0 0
      %351 = vmatpush1.bf16.msra.mxu0 0
      %352 = vmatprep.subr.bf16.mxu0 0
      %353 = vmatpush1.bf16.msra.mxu0 0
      %354 = vmatprep.subr.bf16.mxu0 0
      %355 = vmatpush1.bf16.msra.mxu0 0
      %356 = vmatprep.subr.bf16.mxu0 0
      %357 = vmatpush1.bf16.msra.mxu0 0
      %358 = vmatprep.subr.bf16.mxu0 0
      %359 = vmatpush1.bf16.msra.mxu0 0
      %360 = vmatprep.mubr.bf16.mxu0 0
      %361 = vmatmul.mubr.bf16.gmra.mrb[0].mxu0 %v322
      %v362 = vpop.f32.mrb[0].mxu0
      %v363 = vadd.f32 %v303, %v362
      %v364 = vpop.f32.mrb[0].mxu0
      %v365 = vpop.f32.mrb[0].mxu0
      %v366 = vpop.f32.mrb[0].mxu0
      %367 = vdwg.mxu0
      %v368 = vmax.f32 %v363, 0.0
      %v369 = vpack.c.bf16 %v368, %v368
      %370 = vst [vmem:[%s276] sm:$0xf] %v369
      // Predicated region
      $region33: #{convblock2d_forward.2} parent=31 // pred_check
        %p371 = pneg %p292
      $region34: #{convblock2d_forward.2} parent=31 // pred_check_branch
        %373 = sbr.rel (%p371) target = $region36
      $region35: #{convblock2d_forward.2} parent=31 // pred_region
        %v374 = vlaneseq
        %v375 = vand.u32 %v374, 127
        %vm376 = vcmp.lt.s32.totalorder %v375, 64
        %v377 = vsel %vm376, %v368, 0.0
        %378 = vadd.xlane.f32.xlu0 %v377
        %v379 = vpop.xlane.xlu0 %378
        %vm380 = vcmask 7168
        %381 = vst.msk [vmem:[%s283] sm:$0xff] %vm380, %v379
        %v382 = vmul.f32 %v377, %v377
        %383 = vadd.xlane.f32.xlu0 %v382
        %v384 = vpop.xlane.xlu0 %383
        %385 = vst.msk [vmem:[%s290] sm:$0xff] %vm380, %v384
      $region36: #{convblock2d_forward.2} parent=31 // pred_fallthru
        _
      %p386 = scmp.ne.s32.totalorder %s22, 0
      // Predicated region
      $region37: #{convblock2d_forward.2} parent=31 // pred_check
        %p387 = pneg %p386
      $region38: #{convblock2d_forward.2} parent=31 // pred_check_branch
        %389 = sbr.rel (%p387) target = $region40
      $region39: #{convblock2d_forward.2} parent=31 // pred_region
        %390 = vadd.xlane.f32.xlu0 %v368
        %v391 = vpop.xlane.xlu0 %390
        %vm392 = vcmask 7168
        %393 = vst.msk [vmem:[%s283] sm:$0xff] %vm392, %v391
        %v394 = vmul.f32 %v368, %v368
        %395 = vadd.xlane.f32.xlu0 %v394
        %v396 = vpop.xlane.xlu0 %395
        %397 = vst.msk [vmem:[%s290] sm:$0xff] %vm392, %v396
      $region40: #{convblock2d_forward.2} parent=31 // pred_fallthru
        _
      %p398 = scmp.lt.s32.totalorder %s21, 1
      %s399 = scalar_select %p398, %s21, 1
      %p400 = scmp.lt.s32.totalorder %s22, 0
      %s401 = scalar_select %p400, %s22, 0
      %s402 = sadd.s32 %s401, %s399
      %s403 = smul.addr %s402, 4
      %s404 = scalar_lea.vmem %s3, %s403
      %p405 = scmp.lt.s32.totalorder %s21, 1
      %s406 = scalar_select %p405, %s21, 1
      %p407 = scmp.lt.s32.totalorder %s22, 0
      %s408 = scalar_select %p407, %s22, 0
      %s409 = sadd.s32 %s408, %s406
      %s410 = smul.addr %s409, 8
      %s411 = scalar_lea.vmem %s4, %s410
      %p412 = scmp.lt.s32.totalorder %s21, 1
      %s413 = scalar_select %p412, %s21, 1
      %p414 = scmp.lt.s32.totalorder %s22, 0
      %s415 = scalar_select %p414, %s22, 0
      %s416 = sadd.s32 %s415, %s413
      %s417 = smul.addr %s416, 8
      %s418 = scalar_lea.vmem %s5, %s417
      // Predicated region
      $region41: #{convblock2d_forward.2} parent=31 // pred_check
        %p419 = pneg %p119
      $region42: #{convblock2d_forward.2} parent=31 // pred_check_branch
        %421 = sbr.rel (%p419) target = $region44
      $region43: #{convblock2d_forward.2} parent=31 // pred_region
        _
      $region44: #{convblock2d_forward.2} parent=31 // pred_fallthru
        _
      // Predicated region
      $region45: #{convblock2d_forward.2} parent=31 // pred_check
        %p422 = pneg %p147
      $region46: #{convblock2d_forward.2} parent=31 // pred_check_branch
        %424 = sbr.rel (%p422) target = $region48
      $region47: #{convblock2d_forward.2} parent=31 // pred_region
        _
      $region48: #{convblock2d_forward.2} parent=31 // pred_fallthru
        _
      // Predicated region
      $region49: #{convblock2d_forward.2} parent=31 // pred_check
        %p425 = pneg %p175
      $region50: #{convblock2d_forward.2} parent=31 // pred_check_branch
        %427 = sbr.rel (%p425) target = $region52
      $region51: #{convblock2d_forward.2} parent=31 // pred_region
        _
      $region52: #{convblock2d_forward.2} parent=31 // pred_fallthru
        _
    $region32: #{convblock2d_forward.2} parent=5 // pred_fallthru
      _
    %p428 = scmp.le.s32.totalorder 2, %s12
    // Predicated region
    $region53: #{convblock2d_forward.2} parent=5 // pred_check
      %p429 = pneg %p428
    $region54: #{convblock2d_forward.2} parent=5 // pred_check_branch
      %431 = sbr.rel (%p429) target = $region56
    $region55: #{convblock2d_forward.2} parent=5 // pred_region
      %s432 = ssub.s32 %s12, 2
      // Predicated region
      $region57: #{convblock2d_forward.2} parent=55 // pred_check
        %p433 = pneg %p125
      $region58: #{convblock2d_forward.2} parent=55 // pred_check_branch
        %435 = sbr.rel (%p433) target = $region60
      $region59: #{convblock2d_forward.2} parent=55 // pred_region
        %p436 = scmp.lt.s32.totalorder %s23, 1
        %s437 = scalar_select %p436, %s23, 1
        %p438 = scmp.lt.s32.totalorder %s24, 0
        %s439 = scalar_select %p438, %s24, 0
        %s440 = sadd.s32 %s439, %s437
        %s441 = smul.addr %s440, 4
        %s442 = scalar_lea.vmem %s3, %s441
      $region60: #{convblock2d_forward.2} parent=55 // pred_fallthru
        _
      // Predicated region
      $region61: #{convblock2d_forward.2} parent=55 // pred_check
        %p443 = pneg %p153
      $region62: #{convblock2d_forward.2} parent=55 // pred_check_branch
        %445 = sbr.rel (%p443) target = $region64
      $region63: #{convblock2d_forward.2} parent=55 // pred_region
        %p446 = scmp.lt.s32.totalorder %s23, 1
        %s447 = scalar_select %p446, %s23, 1
        %p448 = scmp.lt.s32.totalorder %s24, 0
        %s449 = scalar_select %p448, %s24, 0
        %s450 = sadd.s32 %s449, %s447
        %s451 = smul.addr %s450, 8
        %s452 = scalar_lea.vmem %s4, %s451
      $region64: #{convblock2d_forward.2} parent=55 // pred_fallthru
        _
      // Predicated region
      $region65: #{convblock2d_forward.2} parent=55 // pred_check
        %p453 = pneg %p181
      $region66: #{convblock2d_forward.2} parent=55 // pred_check_branch
        %455 = sbr.rel (%p453) target = $region68
      $region67: #{convblock2d_forward.2} parent=55 // pred_region
        %p456 = scmp.lt.s32.totalorder %s23, 1
        %s457 = scalar_select %p456, %s23, 1
        %p458 = scmp.lt.s32.totalorder %s24, 0
        %s459 = scalar_select %p458, %s24, 0
        %s460 = sadd.s32 %s459, %s457
        %s461 = smul.addr %s460, 8
        %s462 = scalar_lea.vmem %s5, %s461
      $region68: #{convblock2d_forward.2} parent=55 // pred_fallthru
        _
    $region56: #{convblock2d_forward.2} parent=5 // pred_fallthru
      _
  $region6: #{convblock2d_forward.2} parent=0 // loop_footer
    %s16 = sadd.s32 1, %s12
  $region7: #{convblock2d_forward.2} parent=0 // loop_footer_branch
    %11 = sbr.rel target = $region3
  $region8: #{convblock2d_forward.2} parent=0 // loop_exit
    _

</llo_original>
